<compile_context>
chip_gen: v7x
topology: tpu7x:2x2x1
jax: 0.10.0
libtpu: 0.0.40
codegen_flags: <defaults>
</compile_context>

<pallas_src>
import functools

import jax
import jax.numpy as jnp
from jax import lax
from jax.experimental import pallas as pl
from jax.experimental.pallas import tpu as pltpu


def _triplet_loss_kernel(a_ref, p_ref, n_ref, out_ref, *,
                         margin, n_rows, tile_rows, ragged):
    a = a_ref[...].astype(jnp.float32)
    p = p_ref[...].astype(jnp.float32)
    n = n_ref[...].astype(jnp.float32)

    d1 = a - p
    d2 = a - n
    # (a-p)^2 - (a-n)^2 elementwise; per-row sum gives sq_dist_1 - sq_dist_2.
    e = d1 * d1 - d2 * d2                                   # (T, D)  VPU
    r = jnp.sum(e, axis=-1, keepdims=True)                  # (T, 1)  row reduce
    loss_rows = jnp.maximum(r + jnp.float32(margin), 0.0)   # relu(margin + s1 - s2)

    if ragged:
        # Only the last tile can contain padded (garbage) rows; gate the mask
        # so full tiles skip the iota/compare/select entirely.
        i = pl.program_id(0)
        last = pl.num_programs(0) - 1

        @pl.when(i == last)
        def _():
            row_ids = i * tile_rows + lax.broadcasted_iota(
                jnp.int32, loss_rows.shape, 0)
            # Select (not multiply-by-mask) so NaN/Inf garbage cannot leak in.
            out_ref[0, 0] = jnp.sum(
                jnp.where(row_ids < n_rows, loss_rows, 0.0))

        @pl.when(i != last)
        def _():
            out_ref[0, 0] = jnp.sum(loss_rows)
    else:
        out_ref[0, 0] = jnp.sum(loss_rows)


def _vmem_capacity_bytes():
    try:
        info = pltpu.get_tpu_info()
        cap = getattr(info, "vmem_capacity_bytes", None)
        if cap:
            return int(cap)
    except Exception:
        pass
    # Conservative fallback = v7x per-TensorCore VMEM.
    return 64 * 1024 * 1024


def _select_tile_rows(n_rows, d, itemsize, vmem_cap):
    """Row tile: ~2-4 MiB per input block, multiple of 32, grid >= 2 if possible."""
    if n_rows <= 32:
        return n_rows                         # single block == full row extent

    # Total pipelined working set: 3 inputs x 2 buffers x block_bytes.
    total_budget = min(24 << 20, vmem_cap // 2)
    block_budget = max(1, total_budget // 6)
    row_bytes = max(1, d * itemsize)

    t = block_budget // row_bytes
    t = max(32, (t // 32) * 32)               # multiple of 32 rows
    t = min(t, max(32, (n_rows // 32) * 32))  # never exceed the batch

    # v7x megacore: make sure both TensorCores get a tile when the batch is
    # big enough to split (harmless on single-TC v5e/v6e).
    if n_rows > 64 and pl.cdiv(n_rows, t) < 2:
        half = -(-n_rows // 2)                # ceil(N / 2)
        t = ((half + 31) // 32) * 32          # multiple of 32, < N for N > 64
    return t


def triplet_loss(anchor, positive, negative, margin=2.0):
    """Scalar triplet loss (float32), matching TripletLoss.forward."""
    assert anchor.shape == positive.shape == negative.shape
    assert anchor.ndim == 2, "expected (batch, features)"
    N, D = anchor.shape
    itemsize = jnp.dtype(anchor.dtype).itemsize

    vmem_cap = _vmem_capacity_bytes()
    t = _select_tile_rows(N, D, itemsize, vmem_cap)
    grid_size = pl.cdiv(N, t)
    ragged = (N % t) != 0

    # Raise the scoped-VMEM limit so the double-buffered working set always
    # fits (v5e defaults to 16 MiB), while staying well inside physical VMEM
    # on every generation (v7x: 64 MiB per TC).
    working_set = 3 * 2 * t * D * itemsize
    vmem_limit = min(int(vmem_cap * 0.75),
                     max(32 << 20, working_set + (8 << 20)))

    kernel = functools.partial(
        _triplet_loss_kernel,
        margin=float(margin),
        n_rows=N,
        tile_rows=t,
        ragged=ragged,
    )

    cost = pl.CostEstimate(
        flops=5 * N * D,
        transcendentals=0,
        bytes_accessed=3 * N * D * itemsize + 4 * grid_size,
    )

    partials = pl.pallas_call(
        kernel,
        out_shape=jax.ShapeDtypeStruct((grid_size, 1), jnp.float32),
        grid_spec=pltpu.PrefetchScalarGridSpec(
            num_scalar_prefetch=0,
            grid=(grid_size,),
            in_specs=[
                pl.BlockSpec((t, D), lambda i: (i, 0)),
                pl.BlockSpec((t, D), lambda i: (i, 0)),
                pl.BlockSpec((t, D), lambda i: (i, 0)),
            ],
            out_specs=pl.BlockSpec(
                (1, 1), lambda i: (i, 0), memory_space=pltpu.SMEM
            ),
        ),
        compiler_params=pltpu.CompilerParams(
            # Independent partial sums per step -> parallel (megacore on v7x).
            dimension_semantics=("parallel",),
            vmem_limit_bytes=vmem_limit,
        ),
        cost_estimate=cost,
    )(anchor, positive, negative)

    return jnp.sum(partials) / jnp.float32(N)


def triplet_loss_ref(anchor, positive, negative, margin=2.0):
    s1 = jnp.sum((anchor - positive) ** 2, axis=1)
    s2 = jnp.sum((anchor - negative) ** 2, axis=1)
    return jnp.mean(jnp.maximum(margin + s1 - s2, 0.0))


if __name__ == "__main__":
    key = jax.random.PRNGKey(0)

    # Small demo consistent with the module: batch=10, feature dim=32
    # (non-multiple-of-32 batch, single full-extent tile).
    k1, k2, k3 = jax.random.split(key, 3)
    B, D = 10, 32
    anchor = jax.random.normal(k1, (B, D), dtype=jnp.float32)
    positive = anchor + 0.1 * jax.random.normal(k2, (B, D), dtype=jnp.float32)
    negative = jax.random.normal(k3, (B, D), dtype=jnp.float32)

    loss = triplet_loss(anchor, positive, negative, margin=2.0)
    loss = jax.block_until_ready(loss)
    ref = triplet_loss_ref(anchor, positive, negative, margin=2.0)
    assert jnp.allclose(loss, ref, rtol=1e-5, atol=1e-5), (loss, ref)

    # Second check: multi-tile path with large, budget-derived blocks and a
    # ragged last tile (exercises the pl.when-gated mask).
    k4, k5, k6 = jax.random.split(jax.random.PRNGKey(1), 3)
    B2, D2 = 10000, 128
    a2 = jax.random.normal(k4, (B2, D2), dtype=jnp.float32)
    p2 = a2 + 0.05 * jax.random.normal(k5, (B2, D2), dtype=jnp.float32)
    n2 = jax.random.normal(k6, (B2, D2), dtype=jnp.float32)

    loss2 = triplet_loss(a2, p2, n2, margin=2.0)
    loss2 = jax.block_until_ready(loss2)
    ref2 = triplet_loss_ref(a2, p2, n2, margin=2.0)
    assert jnp.allclose(loss2, ref2, rtol=1e-4, atol=1e-4), (loss2, ref2)

    print("KERNEL_OK")
</pallas_src>

<mosaic_0001>
module attributes {stable_mosaic.version = 11 : i64} {
  func.func @_triplet_loss_kernel(%arg0: i32, %arg1: memref<10x32xf32, #tpu.memory_space<vmem>>, %arg2: memref<10x32xf32, #tpu.memory_space<vmem>>, %arg3: memref<10x32xf32, #tpu.memory_space<vmem>>, %arg4: memref<1x1xf32, #tpu.memory_space<smem>>) attributes {dimension_semantics = [#tpu.dimension_semantics<parallel>], iteration_bounds = array<i64: 1>, scalar_prefetch = 0 : i64, scratch_operands = 0 : i64, tpu.core_type = #tpu.core_type<tc>, window_params = [{transform_indices = @transform_0, window_bounds = array<i64: 10, 32>}, {transform_indices = @transform_1, window_bounds = array<i64: 10, 32>}, {transform_indices = @transform_2, window_bounds = array<i64: 10, 32>}, {transform_indices = @transform_3, window_bounds = array<i64: 1, 1>}]} {
    %c0 = arith.constant 0 : index
    %c0_0 = arith.constant 0 : index
    %0 = vector.load %arg1[%c0, %c0_0] : memref<10x32xf32, #tpu.memory_space<vmem>>, vector<10x32xf32>
    %c0_1 = arith.constant 0 : index
    %c0_2 = arith.constant 0 : index
    %1 = vector.load %arg2[%c0_1, %c0_2] : memref<10x32xf32, #tpu.memory_space<vmem>>, vector<10x32xf32>
    %c0_3 = arith.constant 0 : index
    %c0_4 = arith.constant 0 : index
    %2 = vector.load %arg3[%c0_3, %c0_4] : memref<10x32xf32, #tpu.memory_space<vmem>>, vector<10x32xf32>
    %3 = arith.subf %0, %1 : vector<10x32xf32>
    %4 = arith.subf %0, %2 : vector<10x32xf32>
    %5 = arith.mulf %3, %3 : vector<10x32xf32>
    %6 = arith.mulf %4, %4 : vector<10x32xf32>
    %7 = arith.subf %5, %6 : vector<10x32xf32>
    %cst = arith.constant dense<0.000000e+00> : vector<10xf32>
    %8 = vector.multi_reduction <add>, %7, %cst [1] : vector<10x32xf32> to vector<10xf32>
    %9 = vector.shape_cast %8 : vector<10xf32> to vector<10x1xf32>
    %cst_5 = arith.constant 2.000000e+00 : f32
    %10 = vector.broadcast %cst_5 : f32 to vector<10x1xf32>
    %11 = arith.addf %9, %10 : vector<10x1xf32>
    %cst_6 = arith.constant 0.000000e+00 : f32
    %12 = vector.broadcast %cst_6 : f32 to vector<10x1xf32>
    %13 = arith.maximumf %11, %12 : vector<10x1xf32>
    %14 = vector.shape_cast %13 : vector<10x1xf32> to vector<1x10x1xf32>
    %cst_7 = arith.constant dense<0.000000e+00> : vector<1xf32>
    %15 = vector.multi_reduction <add>, %14, %cst_7 [1, 2] : vector<1x10x1xf32> to vector<1xf32>
    %16 = vector.shape_cast %15 : vector<1xf32> to vector<1x1x1xf32>
    %17 = vector.extract %16[0, 0, 0] : f32 from vector<1x1x1xf32>
    %c0_8 = arith.constant 0 : index
    %c0_9 = arith.constant 0 : index
    %18 = memref.load %arg4[%c0_8, %c0_9] : memref<1x1xf32, #tpu.memory_space<smem>>
    memref.store %17, %arg4[%c0_8, %c0_9] : memref<1x1xf32, #tpu.memory_space<smem>>
    return
  }
  func.func @transform_0(%arg0: i32) -> (i32, i32) {
    %c0_i32 = arith.constant 0 : i32
    %c0_i32_0 = arith.constant 0 : i32
    return %arg0, %c0_i32 : i32, i32
  }
  func.func @transform_1(%arg0: i32) -> (i32, i32) {
    %c0_i32 = arith.constant 0 : i32
    %c0_i32_0 = arith.constant 0 : i32
    return %arg0, %c0_i32 : i32, i32
  }
  func.func @transform_2(%arg0: i32) -> (i32, i32) {
    %c0_i32 = arith.constant 0 : i32
    %c0_i32_0 = arith.constant 0 : i32
    return %arg0, %c0_i32 : i32, i32
  }
  func.func @transform_3(%arg0: i32) -> (i32, i32) {
    %c0_i32 = arith.constant 0 : i32
    %c0_i32_0 = arith.constant 0 : i32
    return %arg0, %c0_i32 : i32, i32
  }
}

</mosaic_0001>

<llo_original>
// kernel: tpu_custom_call.1
$region0: #{tpu_custom_call.1}
  #allocation0 [shape = 'u32[]', space=smem, size = 0x4, offset = 0x4, fixed_abs, tag = 'smem constant byte address 0x4 - core index']
  #allocation1 [shape = 'u32[144,128]{1,0:T(1,128)}', space=vmem, size = 0x12000, scoped, tag = 'internal scratch']
  %s0 = inlined_call_operand.hbm [shape: f32[10,32], index: 0, kind: input, shape index: {}]
  %s1 = inlined_call_operand.hbm [shape: f32[10,32], index: 1, kind: input, shape index: {}]
  %s2 = inlined_call_operand.hbm [shape: f32[10,32], index: 2, kind: input, shape index: {}]
  %s3 = inlined_call_operand.hbm [shape: f32[1,1], index: 3, kind: output, shape index: {}]
  %s4 = sld [smem:[#allocation0]]
  $region34: #{tpu_custom_call.1} parent=0
    _
  %s6 = ssub.s32 1, %s4
  %s7 = scalar_select 0, %s6, %s4
  $region1: #{tpu_custom_call.1} parent=0
    #allocation2 [shape = 'u8[8192]{0}', space=vmem, size = 0x2000, scoped, tag = 'input window, operand 0, single buffered']
    #allocation3 [shape = 's32[1]{0}', space=sflag, size = 0x4, scoped, tag = 'scoped memory for tpu_custom_call.1']
    #allocation4 [shape = 's32[1]{0}', space=sflag, size = 0x4, scoped, tag = 'scoped memory for tpu_custom_call.1']
    #allocation5 [shape = 'u8[8192]{0}', space=vmem, size = 0x2000, scoped, tag = 'input window, operand 1, single buffered']
    #allocation6 [shape = 's32[1]{0}', space=sflag, size = 0x4, scoped, tag = 'scoped memory for tpu_custom_call.1']
    #allocation7 [shape = 'u8[8192]{0}', space=vmem, size = 0x2000, scoped, tag = 'input window, operand 2, single buffered']
    #allocation8 [shape = 'u8[512]{0}', space=smem, size = 0x200, scoped, tag = 'output window, operand 0, single buffered']
    %8 = vsyncpa [#allocation3], 0
    %9 = vsyncpa [#allocation6], 0
    %10 = vsyncpa [#allocation4], 0
    // Predicated region
    $region2: #{tpu_custom_call.1} parent=1 // pred_check
      _
    $region3: #{tpu_custom_call.1} parent=1 // pred_check_branch
      %12 = sbr.rel (0) target = $region5
    $region4: #{tpu_custom_call.1} parent=1 // pred_region
      %s14 = ssub.s32 256, 256
      %15 = vsyncadd [#allocation3], %s14
      %s16 = sshll.u32 [#allocation2], 4
      %s17 = int_to_ptr.vmem [resolvable:$true] %s16
      %22 = dma.hbm_to_vmem [thread:$0]  %s0, 256, %s17, [#allocation3], 128, 128, 8
    $region5: #{tpu_custom_call.1} parent=1 // pred_fallthru
      _
    // Predicated region
    $region6: #{tpu_custom_call.1} parent=1 // pred_check
      _
    $region7: #{tpu_custom_call.1} parent=1 // pred_check_branch
      %24 = sbr.rel (0) target = $region9
    $region8: #{tpu_custom_call.1} parent=1 // pred_region
      %s26 = ssub.s32 256, 256
      %27 = vsyncadd [#allocation6], %s26
      %s28 = sshll.u32 [#allocation5], 4
      %s29 = int_to_ptr.vmem [resolvable:$true] %s28
      %34 = dma.hbm_to_vmem [thread:$0]  %s1, 256, %s29, [#allocation6], 128, 128, 8
    $region9: #{tpu_custom_call.1} parent=1 // pred_fallthru
      _
    // Predicated region
    $region10: #{tpu_custom_call.1} parent=1 // pred_check
      _
    $region11: #{tpu_custom_call.1} parent=1 // pred_check_branch
      %36 = sbr.rel (0) target = $region13
    $region12: #{tpu_custom_call.1} parent=1 // pred_region
      %s38 = ssub.s32 256, 256
      %39 = vsyncadd [#allocation6], %s38
      %s40 = sshll.u32 [#allocation7], 4
      %s41 = int_to_ptr.vmem [resolvable:$true] %s40
      %46 = dma.hbm_to_vmem [thread:$0]  %s2, 256, %s41, [#allocation6], 128, 128, 8
    $region13: #{tpu_custom_call.1} parent=1 // pred_fallthru
      _
    // Predicated region
    $region14: #{tpu_custom_call.1} parent=1 // pred_check
      _
    $region15: #{tpu_custom_call.1} parent=1 // pred_check_branch
      %48 = sbr.rel (0) target = $region17
    $region16: #{tpu_custom_call.1} parent=1 // pred_region
      %49 = dma.done [#allocation3], 256
    $region17: #{tpu_custom_call.1} parent=1 // pred_fallthru
      _
    // Predicated region
    $region18: #{tpu_custom_call.1} parent=1 // pred_check
      _
    $region19: #{tpu_custom_call.1} parent=1 // pred_check_branch
      %51 = sbr.rel (0) target = $region21
    $region20: #{tpu_custom_call.1} parent=1 // pred_region
      %52 = dma.done [#allocation6], 256
    $region21: #{tpu_custom_call.1} parent=1 // pred_fallthru
      _
    // Predicated region
    $region22: #{tpu_custom_call.1} parent=1 // pred_check
      _
    $region23: #{tpu_custom_call.1} parent=1 // pred_check_branch
      %54 = sbr.rel (0) target = $region25
    $region24: #{tpu_custom_call.1} parent=1 // pred_region
      %55 = dma.done [#allocation6], 256
    $region25: #{tpu_custom_call.1} parent=1 // pred_fallthru
      _
    %v56 = vld [vmem:[#allocation2] sm:$0xff]
    %v57 = vld [vmem:[#allocation2 + $0x8] sm:$0x3]
    %v58 = vld [vmem:[#allocation5] sm:$0xff]
    %v59 = vld [vmem:[#allocation5 + $0x8] sm:$0x3]
    %v60 = vld [vmem:[#allocation7] sm:$0xff]
    %v61 = vld [vmem:[#allocation7 + $0x8] sm:$0x3]
    %v62 = vsub.f32 %v56, %v58
    %v63 = vsub.f32 %v57, %v59
    %v64 = vsub.f32 %v56, %v60
    %v65 = vsub.f32 %v57, %v61
    %v66 = vmul.f32 %v62, %v62
    %v67 = vmul.f32 %v63, %v63
    %v68 = vmul.f32 %v64, %v64
    %v69 = vmul.f32 %v65, %v65
    %v70 = vsub.f32 %v66, %v68
    %v71 = vsub.f32 %v67, %v69
    %vm72 = vcmask 261120
    %v73 = vsel %vm72, %v70, 0.0
    %74 = vadd.xlane.f32.xlu0 %v73
    %v75 = vpop.xlane.xlu0 %74
    %vm76 = vcmask 254976
    %v77 = vsel %vm76, %v71, 0.0
    %78 = vadd.xlane.f32.xlu0 %v77
    %v79 = vpop.xlane.xlu0 %78
    %v80 = vadd.f32 %v75, 2.0
    %v81 = vadd.f32 %v79, 2.0
    %v82 = vmax.f32 %v80, 0.0
    %v83 = vmax.f32 %v81, 0.0
    %vm84 = vcmask 7168
    %v85 = vsel %vm84, %v82, 0.0
    %vm86 = vcmask 1024
    %v87 = vsel %vm86, %v83, 0.0
    %v88 = vadd.f32 %v85, %v87
    %89 = vadd.xlane.f32.xlu0 %v88
    %v90 = vpop.xlane.xlu0 %89
    %v91 = vrot.slane %v90, 4
    %v92 = vadd.f32 %v90, %v91
    %v93 = vrot.slane %v92, 2
    %v94 = vadd.f32 %v92, %v93
    %v95 = vrot.slane %v94, 1
    %v96 = vadd.f32 %v94, %v95
    %s97 = vtos %v96
    %s98 = scalar_lea.smem [#allocation8], 0
    %99 = sst [smem:[%s98]] %s97
    // Predicated region
    $region26: #{tpu_custom_call.1} parent=1 // pred_check
      _
    $region27: #{tpu_custom_call.1} parent=1 // pred_check_branch
      %101 = sbr.rel (0) target = $region29
    $region28: #{tpu_custom_call.1} parent=1 // pred_region
      %s103 = ssub.s32 16, 16
      %104 = vsyncadd [#allocation4], %s103
      %107 = dma.smem_to_hbm [#allocation8], 16, %s3, [#allocation4]
    $region29: #{tpu_custom_call.1} parent=1 // pred_fallthru
      _
    // Predicated region
    $region30: #{tpu_custom_call.1} parent=1 // pred_check
      _
    $region31: #{tpu_custom_call.1} parent=1 // pred_check_branch
      %109 = sbr.rel (0) target = $region33
    $region32: #{tpu_custom_call.1} parent=1 // pred_region
      %110 = dma.done [#allocation4], 16
    $region33: #{tpu_custom_call.1} parent=1 // pred_fallthru
      _
    %111 = sfence
    %112 = vsyncpa [#allocation3], 1
    %113 = vsyncpa [#allocation6], 1
    %114 = vsyncpa [#allocation4], 1

</llo_original>
